<compile_context>
chip_gen: v7x
topology: tpu7x:2x2x1
jax: 0.10.0
libtpu: 0.0.40
codegen_flags: <defaults>
</compile_context>

<pallas_src>
import jax
import jax.numpy as jnp
import numpy as np
from jax.experimental import pallas as pl
from jax.experimental.pallas import tpu as pltpu

_NEG_INF = -1e30


def _round_up(n, m):
    return ((n + m - 1) // m) * m


def _choose_batch_tile(B):
    """Sublane-aligned batch tile. Big tiles amortize ~0.35us/step overhead;
    keep >=2 grid steps for medium/large B (v7x: both TensorCores busy);
    bound batch-padding waste to ~12.5%."""
    b8 = _round_up(B, 8)
    cap = 1024
    if b8 <= 16:
        return b8
    tb = min(cap, _round_up((b8 + 1) // 2, 8))
    while tb > 8 and _round_up(B, tb) - B > max(8, B // 8):
        tb = _round_up((tb + 1) // 2, 8)
    return tb


def _policy_net_kernel(x_ref, w1_ref, b1_ref, w2_ref, b2_ref, o_ref):
    cdt = w1_ref.dtype  # matmul-operand dtype (bf16 fast path or f32 parity path)

    # Layer 1: (TB, S) @ (S, H_pad), f32 accumulation, bias + ReLU on VPU.
    x = x_ref[...].astype(cdt)
    h = jnp.dot(x, w1_ref[...], preferred_element_type=jnp.float32)
    h = jnp.maximum(h + b1_ref[...], 0.0)

    # Layer 2: (TB, H_pad) @ (H_pad, A_pad). Padded action lanes of b2 carry
    # -1e30 (and padded w2 columns are zero), so no explicit mask is needed.
    logits = jnp.dot(h.astype(cdt), w2_ref[...],
                     preferred_element_type=jnp.float32)
    logits = logits + b2_ref[...]

    # Numerically stable softmax over the lane (action) axis; divide via EUP.
    m = jnp.max(logits, axis=-1, keepdims=True)
    e = jnp.exp(logits - m)
    denom = jnp.sum(e, axis=-1, keepdims=True)
    inv = pl.reciprocal(denom, approx=False)
    o_ref[...] = (e * inv).astype(o_ref.dtype)


def prepare_params(w1, b1, w2, b2, *, param_dtype=jnp.bfloat16):
    """Pad + cast parameters ONCE (not per forward call).

    w1: (n_states, H), b1: (H,)/(1,H), w2: (H, n_actions), b2: (A,)/(1,A)
    (i.e. weights stored transposed vs. PyTorch). Returns a params dict whose
    arrays are passed straight into the pallas_call.
    """
    S, H = w1.shape
    A = w2.shape[1]
    H_pad = _round_up(max(H, 128), 128)
    A_pad = _round_up(max(A, 128), 128)
    f32 = jnp.float32

    w1p = jnp.zeros((S, H_pad), param_dtype).at[:, :H].set(w1.astype(param_dtype))
    b1p = jnp.zeros((1, H_pad), f32).at[:, :H].set(jnp.reshape(b1, (1, H)).astype(f32))
    w2p = jnp.zeros((H_pad, A_pad), param_dtype).at[:H, :A].set(w2.astype(param_dtype))
    # Bake the action mask into the bias: padded w2 columns are exactly zero
    # and ReLU output is finite, so padded logits equal their b2 lane (-1e30)
    # and vanish in the softmax.
    b2p = jnp.full((1, A_pad), _NEG_INF, f32).at[:, :A].set(
        jnp.reshape(b2, (1, A)).astype(f32))

    return dict(w1=w1p, b1=b1p, w2=w2p, b2=b2p, n_states=S, n_actions=A)


def policy_network_forward(x, params, *, out_dtype=jnp.float32):
    """x: (B, n_states) -> softmax probs (B, n_actions)."""
    w1p, b1p, w2p, b2p = params["w1"], params["b1"], params["w2"], params["b2"]
    S, A = params["n_states"], params["n_actions"]
    H_pad, A_pad = w1p.shape[1], w2p.shape[1]

    B = x.shape[0]
    assert x.shape[1] == S

    TB = _choose_batch_tile(B)
    B_pad = _round_up(B, TB)
    x_in = x if B_pad == B else jnp.zeros((B_pad, S), x.dtype).at[:B].set(x)

    out_itemsize = np.dtype(out_dtype).itemsize
    cost = pl.CostEstimate(
        flops=2 * B_pad * H_pad * (S + A_pad),
        transcendentals=B_pad * A_pad,  # exp in the softmax
        bytes_accessed=(x_in.size * x_in.dtype.itemsize
                        + w1p.size * w1p.dtype.itemsize
                        + w2p.size * w2p.dtype.itemsize
                        + 4 * (b1p.size + b2p.size)
                        + B_pad * A_pad * out_itemsize),
    )

    out = pl.pallas_call(
        _policy_net_kernel,
        out_shape=jax.ShapeDtypeStruct((B_pad, A_pad), out_dtype),
        grid_spec=pl.GridSpec(
            grid=(B_pad // TB,),
            in_specs=[
                pl.BlockSpec((TB, S), lambda i: (i, 0)),        # x: tiled batch
                pl.BlockSpec((S, H_pad), lambda i: (0, 0)),     # w1: resident
                pl.BlockSpec((1, H_pad), lambda i: (0, 0)),     # b1: resident
                pl.BlockSpec((H_pad, A_pad), lambda i: (0, 0)),  # w2: resident
                pl.BlockSpec((1, A_pad), lambda i: (0, 0)),     # b2: resident
            ],
            out_specs=pl.BlockSpec((TB, A_pad), lambda i: (i, 0)),  # lane-dense slab
        ),
        compiler_params=pltpu.CompilerParams(
            dimension_semantics=("parallel",),  # v7x: shard batch across both TCs
        ),
        cost_estimate=cost,
    )(x_in, w1p, b1p, w2p, b2p)

    return out[:B, :A]


def init_params(key, n_states, n_actions, hidden_dim):
    """Deterministic init matching nn.Linear's U(-1/sqrt(fan_in), 1/sqrt(fan_in))."""
    k1, k2, k3, k4 = jax.random.split(key, 4)
    lim1 = 1.0 / jnp.sqrt(jnp.float32(n_states))
    lim2 = 1.0 / jnp.sqrt(jnp.float32(hidden_dim))
    # Stored as (in, out): equivalent to PyTorch weight.T
    w1 = jax.random.uniform(k1, (n_states, hidden_dim), jnp.float32, -lim1, lim1)
    b1 = jax.random.uniform(k2, (1, hidden_dim), jnp.float32, -lim1, lim1)
    w2 = jax.random.uniform(k3, (hidden_dim, n_actions), jnp.float32, -lim2, lim2)
    b2 = jax.random.uniform(k4, (1, n_actions), jnp.float32, -lim2, lim2)
    return w1, b1, w2, b2


if __name__ == "__main__":
    n_states = 4      # e.g. CartPole observation dim
    n_actions = 2     # e.g. CartPole action dim
    hidden_dim = 32
    batch = 8

    key = jax.random.PRNGKey(0)
    kx, kp = jax.random.split(key)
    x = jax.random.normal(kx, (batch, n_states), jnp.float32)
    w1, b1, w2, b2 = init_params(kp, n_states, n_actions, hidden_dim)

    # Reference in plain JAX (same math as the PyTorch forward).
    ref = jax.nn.softmax(jnp.maximum(x @ w1 + b1, 0.0) @ w2 + b2, axis=-1)

    # f32 parity path: exact match with the reference.
    params_f32 = prepare_params(w1, b1, w2, b2, param_dtype=jnp.float32)
    probs_f32 = jax.block_until_ready(policy_network_forward(x, params_f32))
    assert probs_f32.shape == (batch, n_actions)
    assert jnp.allclose(probs_f32, ref, atol=1e-5, rtol=1e-5)
    assert jnp.allclose(jnp.sum(probs_f32, axis=-1), 1.0, atol=1e-5)

    # bf16 fast path (default): bf16 matmul operands, f32 accumulation/softmax.
    params_bf16 = prepare_params(w1, b1, w2, b2)  # param_dtype=bfloat16
    probs_bf16 = jax.block_until_ready(policy_network_forward(x, params_bf16))
    assert probs_bf16.shape == (batch, n_actions)
    assert jnp.allclose(probs_bf16, ref, atol=2e-2, rtol=2e-2)
    assert jnp.allclose(jnp.sum(probs_bf16, axis=-1), 1.0, atol=1e-5)

    print("KERNEL_OK")
</pallas_src>

<mosaic_0001>
module attributes {stable_mosaic.version = 11 : i64} {
  func.func @_policy_net_kernel(%arg0: i32, %arg1: memref<8x4xf32, #tpu.memory_space<vmem>>, %arg2: memref<4x128xf32, #tpu.memory_space<vmem>>, %arg3: memref<1x128xf32, #tpu.memory_space<vmem>>, %arg4: memref<128x128xf32, #tpu.memory_space<vmem>>, %arg5: memref<1x128xf32, #tpu.memory_space<vmem>>, %arg6: memref<8x128xf32, #tpu.memory_space<vmem>>) attributes {dimension_semantics = [#tpu.dimension_semantics<parallel>], iteration_bounds = array<i64: 1>, scalar_prefetch = 0 : i64, scratch_operands = 0 : i64, tpu.core_type = #tpu.core_type<tc>, window_params = [{transform_indices = @transform_0, window_bounds = array<i64: 8, 4>}, {pipeline_mode = #tpu.pipeline_mode<synchronous>, transform_indices = @transform_1, window_bounds = array<i64: 4, 128>}, {pipeline_mode = #tpu.pipeline_mode<synchronous>, transform_indices = @transform_2, window_bounds = array<i64: 1, 128>}, {pipeline_mode = #tpu.pipeline_mode<synchronous>, transform_indices = @transform_3, window_bounds = array<i64: 128, 128>}, {pipeline_mode = #tpu.pipeline_mode<synchronous>, transform_indices = @transform_4, window_bounds = array<i64: 1, 128>}, {transform_indices = @transform_5, window_bounds = array<i64: 8, 128>}]} {
    %c0 = arith.constant 0 : index
    %c0_0 = arith.constant 0 : index
    %0 = vector.load %arg1[%c0, %c0_0] : memref<8x4xf32, #tpu.memory_space<vmem>>, vector<8x4xf32>
    %c0_1 = arith.constant 0 : index
    %c0_2 = arith.constant 0 : index
    %1 = vector.load %arg2[%c0_1, %c0_2] : memref<4x128xf32, #tpu.memory_space<vmem>>, vector<4x128xf32>
    %cst = arith.constant dense<0.000000e+00> : vector<8x128xf32>
    %2 = tpu.matmul %0, %1, %cst {dimension_numbers = #tpu.dot_dimension_numbers<[1], [0], [0], [1], [0, 0, 1, 1], [], []>} : vector<8x4xf32>, vector<4x128xf32>, vector<8x128xf32> -> vector<8x128xf32>
    %c0_3 = arith.constant 0 : index
    %c0_4 = arith.constant 0 : index
    %3 = vector.load %arg3[%c0_3, %c0_4] : memref<1x128xf32, #tpu.memory_space<vmem>>, vector<1x128xf32>
    %4 = vector.broadcast %3 : vector<1x128xf32> to vector<8x128xf32>
    %5 = arith.addf %2, %4 : vector<8x128xf32>
    %cst_5 = arith.constant 0.000000e+00 : f32
    %6 = vector.broadcast %cst_5 : f32 to vector<8x128xf32>
    %7 = arith.maximumf %5, %6 : vector<8x128xf32>
    %c0_6 = arith.constant 0 : index
    %c0_7 = arith.constant 0 : index
    %8 = vector.load %arg4[%c0_6, %c0_7] : memref<128x128xf32, #tpu.memory_space<vmem>>, vector<128x128xf32>
    %cst_8 = arith.constant dense<0.000000e+00> : vector<8x128xf32>
    %9 = tpu.matmul %7, %8, %cst_8 {dimension_numbers = #tpu.dot_dimension_numbers<[1], [0], [0], [1], [0, 0, 1, 1], [], []>} : vector<8x128xf32>, vector<128x128xf32>, vector<8x128xf32> -> vector<8x128xf32>
    %c0_9 = arith.constant 0 : index
    %c0_10 = arith.constant 0 : index
    %10 = vector.load %arg5[%c0_9, %c0_10] : memref<1x128xf32, #tpu.memory_space<vmem>>, vector<1x128xf32>
    %11 = vector.broadcast %10 : vector<1x128xf32> to vector<8x128xf32>
    %12 = arith.addf %9, %11 : vector<8x128xf32>
    %cst_11 = arith.constant dense<0xFF800000> : vector<8xf32>
    %13 = vector.multi_reduction <maximumf>, %12, %cst_11 [1] : vector<8x128xf32> to vector<8xf32>
    %14 = vector.shape_cast %13 : vector<8xf32> to vector<8x1xf32>
    %15 = vector.broadcast %14 : vector<8x1xf32> to vector<8x128xf32>
    %16 = arith.subf %12, %15 : vector<8x128xf32>
    %17 = math.exp %16 : vector<8x128xf32>
    %cst_12 = arith.constant dense<0.000000e+00> : vector<8xf32>
    %18 = vector.multi_reduction <add>, %17, %cst_12 [1] : vector<8x128xf32> to vector<8xf32>
    %19 = vector.shape_cast %18 : vector<8xf32> to vector<8x1xf32>
    %20 = tpu.reciprocal %19 : vector<8x1xf32> -> vector<8x1xf32>
    %21 = vector.broadcast %20 : vector<8x1xf32> to vector<8x128xf32>
    %22 = arith.mulf %17, %21 : vector<8x128xf32>
    %c0_13 = arith.constant 0 : index
    %c0_14 = arith.constant 0 : index
    %23 = vector.load %arg6[%c0_13, %c0_14] : memref<8x128xf32, #tpu.memory_space<vmem>>, vector<8x128xf32>
    tpu.vector_store %arg6[%c0_13, %c0_14], %22 {strides = array<i32>} : memref<8x128xf32, #tpu.memory_space<vmem>>, vector<8x128xf32>,
    return
  }
  func.func @transform_0(%arg0: i32) -> (i32, i32) {
    %c0_i32 = arith.constant 0 : i32
    %c0_i32_0 = arith.constant 0 : i32
    return %arg0, %c0_i32 : i32, i32
  }
  func.func @transform_1(%arg0: i32) -> (i32, i32) {
    %c0_i32 = arith.constant 0 : i32
    %c0_i32_0 = arith.constant 0 : i32
    %c0_i32_1 = arith.constant 0 : i32
    return %c0_i32, %c0_i32_0 : i32, i32
  }
  func.func @transform_2(%arg0: i32) -> (i32, i32) {
    %c0_i32 = arith.constant 0 : i32
    %c0_i32_0 = arith.constant 0 : i32
    %c0_i32_1 = arith.constant 0 : i32
    return %c0_i32, %c0_i32_0 : i32, i32
  }
  func.func @transform_3(%arg0: i32) -> (i32, i32) {
    %c0_i32 = arith.constant 0 : i32
    %c0_i32_0 = arith.constant 0 : i32
    %c0_i32_1 = arith.constant 0 : i32
    return %c0_i32, %c0_i32_0 : i32, i32
  }
  func.func @transform_4(%arg0: i32) -> (i32, i32) {
    %c0_i32 = arith.constant 0 : i32
    %c0_i32_0 = arith.constant 0 : i32
    %c0_i32_1 = arith.constant 0 : i32
    return %c0_i32, %c0_i32_0 : i32, i32
  }
  func.func @transform_5(%arg0: i32) -> (i32, i32) {
    %c0_i32 = arith.constant 0 : i32
    %c0_i32_0 = arith.constant 0 : i32
    return %arg0, %c0_i32 : i32, i32
  }
}

</mosaic_0001>

<llo_original>
// kernel: tpu_custom_call.1
$region0: #{tpu_custom_call.1}
  #allocation0 [shape = 'u32[]', space=smem, size = 0x4, offset = 0x4, fixed_abs, tag = 'smem constant byte address 0x4 - core index']
  #allocation1 [shape = 'u32[144,128]{1,0:T(1,128)}', space=vmem, size = 0x12000, scoped, tag = 'internal scratch']
  %s0 = inlined_call_operand.vmem [shape: f32[8,4], index: 0, kind: input, shape index: {}]
  %s1 = inlined_call_operand.vmem [shape: f32[4,128], index: 1, kind: input, shape index: {}]
  %s2 = inlined_call_operand.vmem [shape: f32[1,128], index: 2, kind: input, shape index: {}]
  %s3 = inlined_call_operand.hbm [shape: f32[128,128], index: 3, kind: input, shape index: {}]
  %s4 = inlined_call_operand.vmem [shape: f32[1,128], index: 4, kind: input, shape index: {}]
  %s5 = inlined_call_operand.hbm [shape: f32[8,128], index: 5, kind: output, shape index: {}]
  %s6 = sld [smem:[#allocation0]]
  $region34: #{tpu_custom_call.1} parent=0
    _
  %s8 = ssub.s32 1, %s6
  %s9 = scalar_select 0, %s8, %s6
  $region1: #{tpu_custom_call.1} parent=0
    #allocation2 [shape = 'u8[65536]{0}', space=vmem, size = 0x10000, scoped, tag = 'input window, operand 3, single buffered']
    #allocation3 [shape = 's32[1]{0}', space=sflag, size = 0x4, scoped, tag = 'scoped memory for tpu_custom_call.1']
    #allocation4 [shape = 's32[1]{0}', space=sflag, size = 0x4, scoped, tag = 'scoped memory for tpu_custom_call.1']
    #allocation5 [shape = 'u8[4096]{0}', space=vmem, size = 0x1000, scoped, tag = 'output window, operand 0, single buffered']
    %10 = vsyncpa [#allocation3], 0
    %11 = vsyncpa [#allocation4], 0
    // Predicated region
    $region2: #{tpu_custom_call.1} parent=1 // pred_check
      _
    $region3: #{tpu_custom_call.1} parent=1 // pred_check_branch
      %13 = sbr.rel (0) target = $region5
    $region4: #{tpu_custom_call.1} parent=1 // pred_region
      _
    $region5: #{tpu_custom_call.1} parent=1 // pred_fallthru
      _
    // Predicated region
    $region6: #{tpu_custom_call.1} parent=1 // pred_check
      _
    $region7: #{tpu_custom_call.1} parent=1 // pred_check_branch
      %15 = sbr.rel (0) target = $region9
    $region8: #{tpu_custom_call.1} parent=1 // pred_region
      _
    $region9: #{tpu_custom_call.1} parent=1 // pred_fallthru
      _
    // Predicated region
    $region10: #{tpu_custom_call.1} parent=1 // pred_check
      _
    $region11: #{tpu_custom_call.1} parent=1 // pred_check_branch
      %17 = sbr.rel (0) target = $region13
    $region12: #{tpu_custom_call.1} parent=1 // pred_region
      _
    $region13: #{tpu_custom_call.1} parent=1 // pred_fallthru
      _
    // Predicated region
    $region14: #{tpu_custom_call.1} parent=1 // pred_check
      _
    $region15: #{tpu_custom_call.1} parent=1 // pred_check_branch
      %19 = sbr.rel (0) target = $region17
    $region16: #{tpu_custom_call.1} parent=1 // pred_region
      %s21 = ssub.s32 2048, 2048
      %22 = vsyncadd [#allocation3], %s21
      %s23 = sshll.u32 [#allocation2], 4
      %s24 = int_to_ptr.vmem [resolvable:$true] %s23
      %29 = dma.hbm_to_vmem [thread:$0]  %s3, 2048, %s24, [#allocation3], 128, 128, 8
    $region17: #{tpu_custom_call.1} parent=1 // pred_fallthru
      _
    // Predicated region
    $region18: #{tpu_custom_call.1} parent=1 // pred_check
      _
    $region19: #{tpu_custom_call.1} parent=1 // pred_check_branch
      %31 = sbr.rel (0) target = $region21
    $region20: #{tpu_custom_call.1} parent=1 // pred_region
      _
    $region21: #{tpu_custom_call.1} parent=1 // pred_fallthru
      _
    // Predicated region
    $region22: #{tpu_custom_call.1} parent=1 // pred_check
      _
    $region23: #{tpu_custom_call.1} parent=1 // pred_check_branch
      %33 = sbr.rel (0) target = $region25
    $region24: #{tpu_custom_call.1} parent=1 // pred_region
      %34 = dma.done [#allocation3], 2048
    $region25: #{tpu_custom_call.1} parent=1 // pred_fallthru
      _
    %v35 = vld [vmem:[%s0] sm:$0xff]
    %v36 = vld [vmem:[%s1] sm:$0xf]
    %v37 = vld [vmem:[%s2] sm:$0x1]
    %v39 = vlaneseq
    %v40 = vshrl.u32 %v39, 7
    %v41 = vsub.s32 0, %v40
    %v42 = vrot.slane %v37, %v41
    %vm44 = vcmask 31744
    %v46 = vsel %vm44, %v35, 0
    %vm48 = vcmask 1043456
    %v50 = vsel %vm48, %v36, 0
    %52 = vmatprep.subr.mxu0 0.0
    %53 = vmatpush1.msra.mxu0 %v50
    %54 = vmatprep.subr.mxu0 0.0
    %55 = vmatpush1.msra.mxu0 0.0
    %56 = vmatprep.subr.mxu0 0.0
    %57 = vmatpush1.msra.mxu0 0.0
    %58 = vmatprep.subr.mxu0 0.0
    %59 = vmatpush1.msra.mxu0 0.0
    %60 = vmatprep.subr.mxu0 0.0
    %61 = vmatpush1.msra.mxu0 0.0
    %62 = vmatprep.subr.mxu0 0.0
    %63 = vmatpush1.msra.mxu0 0.0
    %64 = vmatprep.subr.mxu0 0.0
    %65 = vmatpush1.msra.mxu0 0.0
    %66 = vmatprep.subr.mxu0 0.0
    %67 = vmatpush1.msra.mxu0 0.0
    %68 = vmatprep.subr.mxu0 0.0
    %69 = vmatpush1.msra.mxu0 0.0
    %70 = vmatprep.subr.mxu0 0.0
    %71 = vmatpush1.msra.mxu0 0.0
    %72 = vmatprep.subr.mxu0 0.0
    %73 = vmatpush1.msra.mxu0 0.0
    %74 = vmatprep.subr.mxu0 0.0
    %75 = vmatpush1.msra.mxu0 0.0
    %76 = vmatprep.subr.mxu0 0.0
    %77 = vmatpush1.msra.mxu0 0.0
    %78 = vmatprep.subr.mxu0 0.0
    %79 = vmatpush1.msra.mxu0 0.0
    %80 = vmatprep.subr.mxu0 0.0
    %81 = vmatpush1.msra.mxu0 0.0
    %82 = vmatprep.subr.mxu0 0.0
    %83 = vmatpush1.msra.mxu0 0.0
    %84 = vmatprep.subr.mxu0 0.0
    %85 = vmatpush1.msra.mxu0 0.0
    %86 = vmatprep.subr.mxu0 0.0
    %87 = vmatpush1.msra.mxu0 0.0
    %88 = vmatprep.subr.mxu0 0.0
    %89 = vmatpush1.msra.mxu0 0.0
    %90 = vmatprep.subr.mxu0 0.0
    %91 = vmatpush1.msra.mxu0 0.0
    %92 = vmatprep.subr.mxu0 0.0
    %93 = vmatpush1.msra.mxu0 0.0
    %94 = vmatprep.subr.mxu0 0.0
    %95 = vmatpush1.msra.mxu0 0.0
    %96 = vmatprep.subr.mxu0 0.0
    %97 = vmatpush1.msra.mxu0 0.0
    %98 = vmatprep.subr.mxu0 0.0
    %99 = vmatpush1.msra.mxu0 0.0
    %100 = vmatprep.subr.mxu0 0.0
    %101 = vmatpush1.msra.mxu0 0.0
    %102 = vmatprep.subr.mxu0 0.0
    %103 = vmatpush1.msra.mxu0 0.0
    %104 = vmatprep.subr.mxu0 0.0
    %105 = vmatpush1.msra.mxu0 0.0
    %106 = vmatprep.subr.mxu0 0.0
    %107 = vmatpush1.msra.mxu0 0.0
    %108 = vmatprep.subr.mxu0 0.0
    %109 = vmatpush1.msra.mxu0 0.0
    %110 = vmatprep.subr.mxu0 0.0
    %111 = vmatpush1.msra.mxu0 0.0
    %112 = vmatprep.subr.mxu0 0.0
    %113 = vmatpush1.msra.mxu0 0.0
    %114 = vmatprep.subr.mxu0 0.0
    %115 = vmatpush1.msra.mxu0 0.0
    %116 = vmatprep.mubr.f32.mxu0 0.0
    %117 = vmatmul.mubr.f32.gmra.mrb[0].mxu0 %v46
    %v118 = vpop.f32.mrb[0].mxu0
    %v119 = vadd.f32 %v42, %v118
    %v120 = vpop.f32.mrb[0].mxu0
    %121 = vdwg.mxu0
    %v122 = vmax.f32 %v119, 0.0
    %v123 = vld [vmem:[#allocation2] sm:$0xff]
    %v124 = vld [vmem:[#allocation2 + $0x8] sm:$0xff]
    %v125 = vld [vmem:[#allocation2 + $0x10] sm:$0xff]
    %v126 = vld [vmem:[#allocation2 + $0x18] sm:$0xff]
    %v127 = vld [vmem:[#allocation2 + $0x20] sm:$0xff]
    %v128 = vld [vmem:[#allocation2 + $0x28] sm:$0xff]
    %v129 = vld [vmem:[#allocation2 + $0x30] sm:$0xff]
    %v130 = vld [vmem:[#allocation2 + $0x38] sm:$0xff]
    %v131 = vld [vmem:[#allocation2 + $0x40] sm:$0xff]
    %v132 = vld [vmem:[#allocation2 + $0x48] sm:$0xff]
    %v133 = vld [vmem:[#allocation2 + $0x50] sm:$0xff]
    %v134 = vld [vmem:[#allocation2 + $0x58] sm:$0xff]
    %v135 = vld [vmem:[#allocation2 + $0x60] sm:$0xff]
    %v136 = vld [vmem:[#allocation2 + $0x68] sm:$0xff]
    %v137 = vld [vmem:[#allocation2 + $0x70] sm:$0xff]
    %v138 = vld [vmem:[#allocation2 + $0x78] sm:$0xff]
    %v139 = vld [vmem:[%s4] sm:$0x1]
    %v141 = vlaneseq
    %v142 = vshrl.u32 %v141, 7
    %v143 = vsub.s32 0, %v142
    %v144 = vrot.slane %v139, %v143
    %146 = vmatprep.subr.mxu0 0.0
    %147 = vmatpush1.msra.mxu0 %v123
    %148 = vmatprep.subr.mxu0 0.0
    %149 = vmatpush1.msra.mxu0 %v124
    %150 = vmatprep.subr.mxu0 0.0
    %151 = vmatpush1.msra.mxu0 %v125
    %152 = vmatprep.subr.mxu0 0.0
    %153 = vmatpush1.msra.mxu0 %v126
    %154 = vmatprep.subr.mxu0 0.0
    %155 = vmatpush1.msra.mxu0 %v127
    %156 = vmatprep.subr.mxu0 0.0
    %157 = vmatpush1.msra.mxu0 %v128
    %158 = vmatprep.subr.mxu0 0.0
    %159 = vmatpush1.msra.mxu0 %v129
    %160 = vmatprep.subr.mxu0 0.0
    %161 = vmatpush1.msra.mxu0 %v130
    %162 = vmatprep.subr.mxu0 0.0
    %163 = vmatpush1.msra.mxu0 %v131
    %164 = vmatprep.subr.mxu0 0.0
    %165 = vmatpush1.msra.mxu0 %v132
    %166 = vmatprep.subr.mxu0 0.0
    %167 = vmatpush1.msra.mxu0 %v133
    %168 = vmatprep.subr.mxu0 0.0
    %169 = vmatpush1.msra.mxu0 %v134
    %170 = vmatprep.subr.mxu0 0.0
    %171 = vmatpush1.msra.mxu0 %v135
    %172 = vmatprep.subr.mxu0 0.0
    %173 = vmatpush1.msra.mxu0 %v136
    %174 = vmatprep.subr.mxu0 0.0
    %175 = vmatpush1.msra.mxu0 %v137
    %176 = vmatprep.subr.mxu0 0.0
    %177 = vmatpush1.msra.mxu0 %v138
    %178 = vmatprep.subr.mxu0 0.0
    %179 = vmatpush1.msra.mxu0 0.0
    %180 = vmatprep.subr.mxu0 0.0
    %181 = vmatpush1.msra.mxu0 0.0
    %182 = vmatprep.subr.mxu0 0.0
    %183 = vmatpush1.msra.mxu0 0.0
    %184 = vmatprep.subr.mxu0 0.0
    %185 = vmatpush1.msra.mxu0 0.0
    %186 = vmatprep.subr.mxu0 0.0
    %187 = vmatpush1.msra.mxu0 0.0
    %188 = vmatprep.subr.mxu0 0.0
    %189 = vmatpush1.msra.mxu0 0.0
    %190 = vmatprep.subr.mxu0 0.0
    %191 = vmatpush1.msra.mxu0 0.0
    %192 = vmatprep.subr.mxu0 0.0
    %193 = vmatpush1.msra.mxu0 0.0
    %194 = vmatprep.subr.mxu0 0.0
    %195 = vmatpush1.msra.mxu0 0.0
    %196 = vmatprep.subr.mxu0 0.0
    %197 = vmatpush1.msra.mxu0 0.0
    %198 = vmatprep.subr.mxu0 0.0
    %199 = vmatpush1.msra.mxu0 0.0
    %200 = vmatprep.subr.mxu0 0.0
    %201 = vmatpush1.msra.mxu0 0.0
    %202 = vmatprep.subr.mxu0 0.0
    %203 = vmatpush1.msra.mxu0 0.0
    %204 = vmatprep.subr.mxu0 0.0
    %205 = vmatpush1.msra.mxu0 0.0
    %206 = vmatprep.subr.mxu0 0.0
    %207 = vmatpush1.msra.mxu0 0.0
    %208 = vmatprep.subr.mxu0 0.0
    %209 = vmatpush1.msra.mxu0 0.0
    %210 = vmatprep.mubr.f32.mxu0 0.0
    %211 = vmatmul.mubr.f32.gmra.mrb[0].mxu0 %v122
    %v212 = vpop.f32.mrb[0].mxu0
    %v213 = vadd.f32 %v144, %v212
    %v214 = vpop.f32.mrb[0].mxu0
    %215 = vdwg.mxu0
    %216 = vmax.xlane.f32.xlu0 %v213
    %v217 = vpop.xlane.xlu0 %216
    %v218 = vsub.f32 %v213, %v217
    %v219 = vmul.f32 %v218, 1.442695
    %v220 = vpow.pop %v219
    %221 = vadd.xlane.f32.xlu0 %v220
    %v222 = vpop.xlane.xlu0 %221
    %v223 = vrcp.pop %v222
    %v224 = vmul.f32 %v220, %v223
    %225 = vst [vmem:[#allocation5] sm:$0xff] %v224
    // Predicated region
    $region26: #{tpu_custom_call.1} parent=1 // pred_check
      _
    $region27: #{tpu_custom_call.1} parent=1 // pred_check_branch
      %227 = sbr.rel (0) target = $region29
    $region28: #{tpu_custom_call.1} parent=1 // pred_region
      %s229 = ssub.s32 128, 128
      %230 = vsyncadd [#allocation4], %s229
      %s232 = sshll.u32 [#allocation5], 4
      %s233 = int_to_ptr.vmem [resolvable:$true] %s232
      %235 = dma.vmem_to_hbm [thread:$0]  %s233, 128, %s5, [#allocation4]
    $region29: #{tpu_custom_call.1} parent=1 // pred_fallthru
      _
    // Predicated region
    $region30: #{tpu_custom_call.1} parent=1 // pred_check
      _
    $region31: #{tpu_custom_call.1} parent=1 // pred_check_branch
      %237 = sbr.rel (0) target = $region33
    $region32: #{tpu_custom_call.1} parent=1 // pred_region
      %238 = dma.done [#allocation4], 128
    $region33: #{tpu_custom_call.1} parent=1 // pred_fallthru
      _
    %239 = vsyncpa [#allocation3], 1
    %240 = vsyncpa [#allocation4], 1

</llo_original>
